<compile_context>
chip_gen: v5e
topology: v5e:2x2
jax: 0.10.0
libtpu: 0.0.40
codegen_flags: <defaults>
</compile_context>

<pallas_src>
import numpy as np
import jax
import jax.numpy as jnp
from jax.experimental import pallas as pl
from jax.experimental.pallas import tpu as pltpu

# ----------------------------------------------------------------------------
# Synthetic configuration (replaces `param`, `parents`)
# ----------------------------------------------------------------------------
PARAM = dict(
    kernel_size_temporal_dim=3,   # -> padding = 1
    stride_encoder_conv=2,
    channel_factor=2,
    neighbor_distance=1,
    latent_dim=16,
)
K_T = PARAM["kernel_size_temporal_dim"]
PAD = (K_T - 1) // 2
STRIDE = PARAM["stride_encoder_conv"]
FACTOR = PARAM["channel_factor"]
LATENT = PARAM["latent_dim"]

# 8 skeleton edges: two chains of 4 hanging off the root edge.
ENC_PARENTS = [
    [-1, 0, 1, 2, 0, 4, 5, 6],   # level 0 : 8 edges
    [-1, 0, 0, 2],               # level 1 : 4 edges
    [-1, 0],                     # level 2 : 2 edges
    [-1],                        # level 3 : 1 edge
]
ENC_POOL = [                      # SkeletonPool lists (old-edge groups per new edge)
    [[0, 1], [2, 3], [4, 5], [6, 7]],
    [[0, 1], [2, 3]],
    [[0, 1]],
]
ENC_CH = [8, 8 * FACTOR, 8 * FACTOR ** 2, 8 * FACTOR ** 3]        # [8,16,32,64]

# Decoder hierarchy carries an extra displacement edge (always the LAST edge).
DEC_PARENTS = [
    [-1, 0, 1, 2, 0, 4, 5, 6, 0],  # finest : 8 edges + displacement
    [-1, 0, 0, 2, 0],              #          4 edges + displacement
    [-1, 0, 0],                    #          2 edges + displacement
    [-1, 0],                       # coarsest: 2 edges
]
DEC_UNPOOL = [                     # SkeletonUnpool lists per decoder layer (coarse->fine)
    [[0, 1], [2]],
    [[0, 1], [2, 3], [4]],
    [[0, 1], [2, 3], [4, 5], [6, 7], [8]],
]
DEC_CH = [4, 4 * FACTOR, 4 * FACTOR ** 2, 4 * FACTOR ** 3]        # [4,8,16,32]

CH_PER_JOINT = 4  # quaternion part of the dual quaternion
LEAKY = 0.2

# Temporal sizes through the encoder (input clip length must be 8).
T_ENC = [8, 4, 2, 1]

# Derived channel bookkeeping ------------------------------------------------
ENC_IN_CH = [len(ENC_PARENTS[l]) * ENC_CH[l] for l in range(3)]            # [64,64,64]
ENC_OUT_CH = [len(ENC_PARENTS[l + 1]) * ENC_CH[l + 1] for l in range(3)]   # [64,64,64]
DEC_IN_CH = [len(DEC_UNPOOL[l]) * DEC_CH[3 - l] for l in range(3)]         # [64,48,40]
DEC_OUT_CH = [len(DEC_PARENTS[2 - l]) * (DEC_CH[3 - l] // FACTOR)
              for l in range(3)]                                           # [48,40,36]
N_OUT = DEC_OUT_CH[-1]                    # 36 (32 motion + 4 displacement)
MOTION_CH = N_OUT - CH_PER_JOINT          # 32
FEAT_ENC = T_ENC[3] * ENC_OUT_CH[2]       # 64
FEAT_DEC = DEC_IN_CH[0]                   # 64
LAT2 = 2 * LATENT                         # 32
OUT_COLS = 128                            # lane-dense output slab width

# Static layout of the single packed bf16 weight buffer ----------------------
W_SHAPES = (
    [(T_ENC[l] * ENC_IN_CH[l], T_ENC[l + 1] * ENC_OUT_CH[l]) for l in range(3)]
    + [(FEAT_ENC, LAT2), (LATENT, FEAT_DEC)]
    + [(DEC_IN_CH[l], DEC_OUT_CH[l]) for l in range(3)]
    + [(N_OUT, N_OUT)]                    # block-diagonal quat sum-of-squares matrix
)
BIAS_WIDTHS = (
    [T_ENC[l + 1] * ENC_OUT_CH[l] for l in range(3)]
    + [LAT2, FEAT_DEC]
    + [DEC_OUT_CH[l] for l in range(3)]
)
WPACK_COLS = max(c for _, c in W_SHAPES)  # 256


def _round16(n):
    return -(-n // 16) * 16


W_LAYOUT = []
_off = 0
for _r, _c in W_SHAPES:
    W_LAYOUT.append((_off, _r, _c))
    _off += _round16(_r)                  # keep bf16 sublane (16) alignment of offsets
WPACK_ROWS = _off


# ----------------------------------------------------------------------------
# The single fused Pallas kernel
# ----------------------------------------------------------------------------
def _vae_kernel(x_ref, eps_ref, w_ref, b_ref, stats_ref, out_ref):
    """Whole VAE forward: encoder -> reparameterize -> decoder -> quat epilogue."""

    def wmat(i):
        off, r, c = W_LAYOUT[i]
        return w_ref[off:off + r, 0:c]            # static ref view, zero-cost slice

    def bias(i):
        return b_ref[i:i + 1, 0:BIAS_WIDTHS[i]]   # (1, width) f32, broadcasts over rows

    def mm(a, i):
        return jnp.dot(a.astype(jnp.bfloat16), wmat(i),
                       preferred_element_type=jnp.float32)

    def leaky(a):
        return jnp.where(a >= 0.0, a, LEAKY * a)

    B = x_ref.shape[0]

    # --- Encoder: each layer = ONE matmul (conv taps, stride, zero padding and the
    #     SkeletonPool averaging are folded into the weight) + bias + LeakyReLU. ---
    h = x_ref[...]                                # (B, 512) f32
    for l in range(3):
        h = leaky(mm(h, l) + bias(l))             # (B, 256) -> (B, 128) -> (B, 64)

    # --- fused f_mu | f_logvar + in-kernel reparameterize ---
    ml = mm(h, 3) + bias(3)                       # (B, 2*LATENT)
    mu = ml[:, :LATENT]
    logvar = ml[:, LATENT:LAT2]
    std = jnp.exp(0.5 * logvar)                   # EUP
    z = mu + eps_ref[...] * std                   # (B, LATENT)

    # --- Decoder: f_latent, then 3x (SkeletonUnpool o SkeletonConv center tap),
    #     each folded into a single matmul (decoder temporal dim is 1). ---
    h = mm(z, 4) + bias(4)                        # (B, 64)
    for l in range(3):
        h = mm(h, 5 + l) + bias(5 + l)            # (B,48) -> (B,40) -> (B,36)
        if l != 2:
            h = leaky(h)

    # --- quaternion de-normalize / normalize / re-normalize epilogue ---
    mean = stats_ref[0:1, :]                      # (1, 36)
    stdv = stats_ref[1:2, :]
    istd = stats_ref[2:3, :]                      # precomputed 1/std (no in-kernel divide)
    q = h * stdv + mean
    ss = jnp.dot((q * q).astype(jnp.bfloat16), wmat(8),
                 preferred_element_type=jnp.float32)   # per-quaternion sum of squares
    qn = q * jax.lax.rsqrt(ss + 1e-12)            # TODO(synk): quat.normalize assumed q/|q|
    ren = (qn - mean) * istd
    col = jax.lax.broadcasted_iota(jnp.int32, (B, N_OUT), 1)
    out36 = jnp.where(col < MOTION_CH, ren, h)    # displacement lanes pass through raw

    # --- single lane-dense (B, 128) output slab: [mu | logvar | z | out36 | 0-pad] ---
    out_ref[:, 0:LATENT] = mu
    out_ref[:, LATENT:LAT2] = logvar
    out_ref[:, LAT2:3 * LATENT] = z
    out_ref[:, 3 * LATENT:3 * LATENT + N_OUT] = out36
    out_ref[:, 3 * LATENT + N_OUT:OUT_COLS] = jnp.zeros(
        (B, OUT_COLS - 3 * LATENT - N_OUT), jnp.float32)


def _full_spec(a):
    nd = a.ndim
    return pl.BlockSpec(a.shape, lambda i: (0,) * nd)


_COMPILER_PARAMS = pltpu.CompilerParams(dimension_semantics=("arbitrary",))


# ----------------------------------------------------------------------------
# Skeleton helpers (deterministic re-implementations)
# ----------------------------------------------------------------------------
def find_neighbor(parents, dist):
    J = len(parents)
    adj = np.eye(J, dtype=np.int32)
    for i in range(J):
        for j in range(J):
            if i == j:
                continue
            if parents[i] == j or parents[j] == i or \
               (parents[i] == parents[j] and parents[i] >= 0):
                adj[i, j] = 1
    reach = np.eye(J, dtype=np.int32)
    for _ in range(dist):
        reach = ((reach @ adj) > 0).astype(np.int32)
    return [sorted(np.nonzero(reach[i])[0].tolist()) for i in range(J)]


def conv_params(key, neighbor_list, in_pj, out_pj, k):
    """Masked SkeletonConv weights: output joint j only sees its neighbors."""
    J = len(neighbor_list)
    cin, cout = J * in_pj, J * out_pj
    mask = np.zeros((cout, cin, k), np.float32)
    for j, nbrs in enumerate(neighbor_list):
        for n in nbrs:
            mask[j * out_pj:(j + 1) * out_pj, n * in_pj:(n + 1) * in_pj, :] = 1.0
    kw, kb = jax.random.split(key)
    w = jax.random.normal(kw, (cout, cin, k), jnp.float32) / np.sqrt(cin * k)
    w = w * jnp.asarray(mask)
    b = jax.random.normal(kb, (cout,), jnp.float32) * 0.05
    return np.asarray(w), np.asarray(b)


def pool_matrix(groups, cpe, n_old):
    """SkeletonPool as a (C_new, C_old) averaging matrix."""
    P = np.zeros((len(groups) * cpe, n_old * cpe), np.float32)
    for g, members in enumerate(groups):
        for m in members:
            for c in range(cpe):
                P[g * cpe + c, m * cpe + c] = 1.0 / len(members)
    return P


def unpool_matrix(groups, cpe):
    """SkeletonUnpool as a (C_fine, C_coarse) copy matrix."""
    n_fine = max(max(g) for g in groups) + 1
    U = np.zeros((n_fine * cpe, len(groups) * cpe), np.float32)
    for g, members in enumerate(groups):
        for m in members:
            for c in range(cpe):
                U[m * cpe + c, g * cpe + c] = 1.0
    return U


def linear_params(key, fin, fout, zero_weight=False):
    kw, kb = jax.random.split(key)
    if zero_weight:
        w = jnp.zeros((fout, fin), jnp.float32)
    else:
        w = jax.random.normal(kw, (fout, fin), jnp.float32) / np.sqrt(fin)
    b = jax.random.normal(kb, (fout,), jnp.float32) * 0.05
    return np.asarray(w), np.asarray(b)


def _fold_encoder_layer(w, b, P, t_in, t_out, ci_major):
    """Fold conv taps + zero padding + stride + SkeletonPool into one matrix.

    Result maps flattened input rows (t_in*Cin, or Cin*t_in for the first layer)
    to flattened output columns ordered (t_out, C_pooled).  Math is exact.
    """
    cout, cin, k_t = w.shape
    cnew = P.shape[0]
    wp = np.einsum("nc,cik->nik", P, w)              # pool o conv, per tap: (Cnew,Cin,K)
    W = np.zeros((t_in, cin, t_out, cnew), np.float32)
    for t in range(t_out):
        for k in range(k_t):
            ti = STRIDE * t + k - PAD
            if 0 <= ti < t_in:                       # out-of-range taps = zero padding
                W[ti, :, t, :] += wp[:, :, k].T
    if ci_major:                                     # layer 0 input is x.reshape(B, C*T)
        W = W.transpose(1, 0, 2, 3)
    Wf = W.reshape(t_in * cin, t_out * cnew)
    bf = np.tile(P @ b, t_out).astype(np.float32)    # pooled bias, tiled per output time
    return Wf, bf


# ----------------------------------------------------------------------------
# Parameter init: all folding done in f32, ONE bf16 quantization, two packed buffers
# ----------------------------------------------------------------------------
def init_autoencoder(key):
    keys = jax.random.split(key, 9)
    weights, biases = [], []

    # ---- Encoder: 3x (SkeletonConv -> SkeletonPool), each folded to one matrix ----
    for l in range(3):
        nbrs = find_neighbor(ENC_PARENTS[l], PARAM["neighbor_distance"])
        w, b = conv_params(keys[l], nbrs, ENC_CH[l], ENC_CH[l + 1], K_T)
        P = pool_matrix(ENC_POOL[l], ENC_CH[l + 1], len(ENC_PARENTS[l]))
        Wf, bf = _fold_encoder_layer(w, b, P, T_ENC[l], T_ENC[l + 1], ci_major=(l == 0))
        weights.append(Wf)
        biases.append(bf)

    # ---- f_mu | f_logvar (logvar weight zero-initialised, as in the reference) ----
    w_mu, b_mu = linear_params(keys[3], FEAT_ENC, LATENT)
    w_lv, b_lv = linear_params(keys[4], FEAT_ENC, LATENT, zero_weight=True)
    weights.append(np.concatenate([w_mu.T, w_lv.T], axis=1))        # (64, 2*latent)
    biases.append(np.concatenate([b_mu, b_lv]))

    # ---- Decoder: f_latent, then 3x (SkeletonUnpool o SkeletonConv) folded ----
    w_lat, b_lat = linear_params(keys[5], LATENT, FEAT_DEC)
    weights.append(w_lat.T)                                         # (latent, 64)
    biases.append(b_lat)
    for l in range(3):
        lvl = 2 - l
        nbrs = find_neighbor(DEC_PARENTS[lvl], PARAM["neighbor_distance"])
        cpe = DEC_CH[lvl + 1]
        w, b = conv_params(keys[6 + l], nbrs, cpe, cpe // FACTOR, K_T)
        U = unpool_matrix(DEC_UNPOOL[l], cpe)                       # (C_fine, C_coarse)
        Wc = w[:, :, PAD]                                           # center tap (T == 1)
        weights.append(U.T @ Wc.T)                                  # (C_coarse, C_out)
        biases.append(b)

    # ---- block-diagonal "sum within quaternion" matrix for the fused epilogue ----
    G = np.zeros((N_OUT, N_OUT), np.float32)
    for j in range(N_OUT // CH_PER_JOINT):
        G[j * CH_PER_JOINT:(j + 1) * CH_PER_JOINT,
          j * CH_PER_JOINT:(j + 1) * CH_PER_JOINT] = 1.0
    weights.append(G)

    # ---- pack: ONE bf16 weight buffer + ONE f32 bias buffer (few DMA descriptors) ----
    wpack = np.zeros((WPACK_ROWS, WPACK_COLS), np.float32)
    for (off, r, c), W in zip(W_LAYOUT, weights):
        assert W.shape == (r, c), (W.shape, (r, c))
        wpack[off:off + r, :c] = W
    bpack = np.zeros((len(biases), WPACK_COLS), np.float32)
    for i, b in enumerate(biases):
        assert b.shape == (BIAS_WIDTHS[i],), (b.shape, BIAS_WIDTHS[i])
        bpack[i, :b.shape[0]] = b

    return dict(wpack=jnp.asarray(wpack, jnp.bfloat16),
                bpack=jnp.asarray(bpack, jnp.float32))


# ----------------------------------------------------------------------------
# Forward pass: exactly ONE pallas_call
# ----------------------------------------------------------------------------
def autoencoder_forward(params, input_motion, mean_dqs, std_dqs, eps_key):
    is_consecutive = input_motion.ndim > 3
    if is_consecutive:
        input_motion = input_motion.reshape((-1,) + input_motion.shape[2:])
    B, C, T = input_motion.shape
    assert C == ENC_IN_CH[0] and T == T_ENC[0], "fused weights were built for (C=64, T=8)"

    # (B, C, T) -> (B, C*T) is a free contiguous reshape; the (channel, time) row
    # ordering is folded into the first encoder weight matrix at init time.
    x_flat = input_motion.reshape(B, C * T).astype(jnp.float32)
    eps = jax.random.normal(eps_key, (B, LATENT), jnp.float32)   # replaces torch.randn_like

    # [mean; std; 1/std] over the 36 decoder output lanes (displacement lanes: 0/1/1).
    mean_c = mean_dqs.reshape(-1, 8)[:, :CH_PER_JOINT].reshape(-1).astype(jnp.float32)
    std_c = std_dqs.reshape(-1, 8)[:, :CH_PER_JOINT].reshape(-1).astype(jnp.float32)
    pad = N_OUT - MOTION_CH
    mean_full = jnp.concatenate([mean_c, jnp.zeros((pad,), jnp.float32)])
    std_full = jnp.concatenate([std_c, jnp.ones((pad,), jnp.float32)])
    stats = jnp.stack([mean_full, std_full, 1.0 / std_full], axis=0)       # (3, 36)

    args = [x_flat, eps, params["wpack"], params["bpack"], stats]
    out = pl.pallas_call(
        _vae_kernel,
        grid=(1,),   # TODO(synk): tile rows with a "parallel" grid once batch >> 2
        out_shape=jax.ShapeDtypeStruct((B, OUT_COLS), jnp.float32),
        in_specs=[_full_spec(a) for a in args],
        out_specs=pl.BlockSpec((B, OUT_COLS), lambda i: (0, 0)),
        compiler_params=_COMPILER_PARAMS,
    )(*args)

    mu = out[:, 0:LATENT]
    logvar = out[:, LATENT:LAT2]
    latent = out[:, LAT2:3 * LATENT]
    o36 = out[:, 3 * LATENT:3 * LATENT + N_OUT]
    motion = o36[:, :MOTION_CH].reshape(B, MOTION_CH, 1)
    displacement = o36[:, MOTION_CH:MOTION_CH + 3].reshape(B, 3, 1)

    if is_consecutive:
        n = B // 2
        motion = motion.reshape((n, 2) + motion.shape[1:])
        displacement = displacement.reshape((n, 2) + displacement.shape[1:])
        mu = mu.reshape((n, 2) + mu.shape[1:])
        logvar = logvar.reshape((n, 2) + logvar.shape[1:])
    return motion, displacement, mu, logvar, latent


# ----------------------------------------------------------------------------
if __name__ == "__main__":
    params = init_autoencoder(jax.random.PRNGKey(42))

    key = jax.random.PRNGKey(0)
    k_in, k_mean, k_std, k_eps = jax.random.split(key, 4)
    B, T = 2, T_ENC[0]
    input_motion = jax.random.normal(k_in, (B, ENC_IN_CH[0], T), jnp.float32)   # (2, 64, 8)
    mean_dqs = jax.random.normal(k_mean, (8, 8), jnp.float32) * 0.1
    std_dqs = jax.random.uniform(k_std, (8, 8), jnp.float32, minval=0.5, maxval=1.5)

    fwd = jax.jit(autoencoder_forward)
    outs = jax.block_until_ready(fwd(params, input_motion, mean_dqs, std_dqs, k_eps))

    motion, disp, mu, logvar, latent = outs
    assert motion.shape == (B, MOTION_CH, 1) and disp.shape == (B, 3, 1)
    assert mu.shape == (B, LATENT) and logvar.shape == (B, LATENT)
    assert latent.shape == (B, LATENT)
    assert all(bool(jnp.all(jnp.isfinite(o))) for o in outs)
    print("KERNEL_OK")
</pallas_src>

<mosaic_0001>
module attributes {stable_mosaic.version = 11 : i64} {
  func.func @_vae_kernel(%arg0: i32, %arg1: memref<2x512xf32, #tpu.memory_space<vmem>>, %arg2: memref<2x16xf32, #tpu.memory_space<vmem>>, %arg3: memref<1184x256xbf16, #tpu.memory_space<vmem>>, %arg4: memref<8x256xf32, #tpu.memory_space<vmem>>, %arg5: memref<3x36xf32, #tpu.memory_space<vmem>>, %arg6: memref<2x128xf32, #tpu.memory_space<vmem>>) attributes {dimension_semantics = [#tpu.dimension_semantics<arbitrary>], iteration_bounds = array<i64: 1>, scalar_prefetch = 0 : i64, scratch_operands = 0 : i64, tpu.core_type = #tpu.core_type<tc>, window_params = [{pipeline_mode = #tpu.pipeline_mode<synchronous>, transform_indices = @transform_0, window_bounds = array<i64: 2, 512>}, {pipeline_mode = #tpu.pipeline_mode<synchronous>, transform_indices = @transform_1, window_bounds = array<i64: 2, 16>}, {pipeline_mode = #tpu.pipeline_mode<synchronous>, transform_indices = @transform_2, window_bounds = array<i64: 1184, 256>}, {pipeline_mode = #tpu.pipeline_mode<synchronous>, transform_indices = @transform_3, window_bounds = array<i64: 8, 256>}, {pipeline_mode = #tpu.pipeline_mode<synchronous>, transform_indices = @transform_4, window_bounds = array<i64: 3, 36>}, {pipeline_mode = #tpu.pipeline_mode<synchronous>, transform_indices = @transform_5, window_bounds = array<i64: 2, 128>}]} {
    %c0 = arith.constant 0 : index
    %c0_0 = arith.constant 0 : index
    %0 = vector.load %arg1[%c0, %c0_0] : memref<2x512xf32, #tpu.memory_space<vmem>>, vector<2x512xf32>
    %1 = arith.truncf %0 : vector<2x512xf32> to vector<2x512xbf16>
    %c0_1 = arith.constant 0 : index
    %c0_2 = arith.constant 0 : index
    %2 = vector.load %arg3[%c0_1, %c0_2] : memref<1184x256xbf16, #tpu.memory_space<vmem>>, vector<512x256xbf16>
    %cst = arith.constant dense<0.000000e+00> : vector<2x256xf32>
    %3 = tpu.matmul %1, %2, %cst {dimension_numbers = #tpu.dot_dimension_numbers<[1], [0], [0], [1], [0, 0, 1, 1], [], []>} : vector<2x512xbf16>, vector<512x256xbf16>, vector<2x256xf32> -> vector<2x256xf32>
    %c0_3 = arith.constant 0 : index
    %c0_4 = arith.constant 0 : index
    %4 = vector.load %arg4[%c0_3, %c0_4] : memref<8x256xf32, #tpu.memory_space<vmem>>, vector<1x256xf32>
    %5 = vector.broadcast %4 : vector<1x256xf32> to vector<2x256xf32>
    %6 = arith.addf %3, %5 : vector<2x256xf32>
    %cst_5 = arith.constant 0.000000e+00 : f32
    %7 = vector.broadcast %cst_5 : f32 to vector<2x256xf32>
    %8 = arith.cmpf oge, %6, %7 : vector<2x256xf32>
    %cst_6 = arith.constant 2.000000e-01 : f32
    %9 = vector.broadcast %cst_6 : f32 to vector<2x256xf32>
    %10 = arith.mulf %9, %6 : vector<2x256xf32>
    %11 = arith.select %8, %6, %10 : vector<2x256xi1>, vector<2x256xf32>
    %12 = arith.truncf %11 : vector<2x256xf32> to vector<2x256xbf16>
    %c512 = arith.constant 512 : index
    %c0_7 = arith.constant 0 : index
    %13 = vector.load %arg3[%c512, %c0_7] : memref<1184x256xbf16, #tpu.memory_space<vmem>>, vector<256x128xbf16>
    %cst_8 = arith.constant dense<0.000000e+00> : vector<2x128xf32>
    %14 = tpu.matmul %12, %13, %cst_8 {dimension_numbers = #tpu.dot_dimension_numbers<[1], [0], [0], [1], [0, 0, 1, 1], [], []>} : vector<2x256xbf16>, vector<256x128xbf16>, vector<2x128xf32> -> vector<2x128xf32>
    %c1 = arith.constant 1 : index
    %c0_9 = arith.constant 0 : index
    %15 = vector.load %arg4[%c1, %c0_9] : memref<8x256xf32, #tpu.memory_space<vmem>>, vector<1x128xf32>
    %16 = vector.broadcast %15 : vector<1x128xf32> to vector<2x128xf32>
    %17 = arith.addf %14, %16 : vector<2x128xf32>
    %cst_10 = arith.constant 0.000000e+00 : f32
    %18 = vector.broadcast %cst_10 : f32 to vector<2x128xf32>
    %19 = arith.cmpf oge, %17, %18 : vector<2x128xf32>
    %cst_11 = arith.constant 2.000000e-01 : f32
    %20 = vector.broadcast %cst_11 : f32 to vector<2x128xf32>
    %21 = arith.mulf %20, %17 : vector<2x128xf32>
    %22 = arith.select %19, %17, %21 : vector<2x128xi1>, vector<2x128xf32>
    %23 = arith.truncf %22 : vector<2x128xf32> to vector<2x128xbf16>
    %c768 = arith.constant 768 : index
    %c0_12 = arith.constant 0 : index
    %24 = vector.load %arg3[%c768, %c0_12] : memref<1184x256xbf16, #tpu.memory_space<vmem>>, vector<128x64xbf16>
    %cst_13 = arith.constant dense<0.000000e+00> : vector<2x64xf32>
    %25 = tpu.matmul %23, %24, %cst_13 {dimension_numbers = #tpu.dot_dimension_numbers<[1], [0], [0], [1], [0, 0, 1, 1], [], []>} : vector<2x128xbf16>, vector<128x64xbf16>, vector<2x64xf32> -> vector<2x64xf32>
    %c2 = arith.constant 2 : index
    %c0_14 = arith.constant 0 : index
    %26 = vector.load %arg4[%c2, %c0_14] : memref<8x256xf32, #tpu.memory_space<vmem>>, vector<1x64xf32>
    %27 = vector.broadcast %26 : vector<1x64xf32> to vector<2x64xf32>
    %28 = arith.addf %25, %27 : vector<2x64xf32>
    %cst_15 = arith.constant 0.000000e+00 : f32
    %29 = vector.broadcast %cst_15 : f32 to vector<2x64xf32>
    %30 = arith.cmpf oge, %28, %29 : vector<2x64xf32>
    %cst_16 = arith.constant 2.000000e-01 : f32
    %31 = vector.broadcast %cst_16 : f32 to vector<2x64xf32>
    %32 = arith.mulf %31, %28 : vector<2x64xf32>
    %33 = arith.select %30, %28, %32 : vector<2x64xi1>, vector<2x64xf32>
    %34 = arith.truncf %33 : vector<2x64xf32> to vector<2x64xbf16>
    %c896 = arith.constant 896 : index
    %c0_17 = arith.constant 0 : index
    %35 = vector.load %arg3[%c896, %c0_17] : memref<1184x256xbf16, #tpu.memory_space<vmem>>, vector<64x32xbf16>
    %cst_18 = arith.constant dense<0.000000e+00> : vector<2x32xf32>
    %36 = tpu.matmul %34, %35, %cst_18 {dimension_numbers = #tpu.dot_dimension_numbers<[1], [0], [0], [1], [0, 0, 1, 1], [], []>} : vector<2x64xbf16>, vector<64x32xbf16>, vector<2x32xf32> -> vector<2x32xf32>
    %c3 = arith.constant 3 : index
    %c0_19 = arith.constant 0 : index
    %37 = vector.load %arg4[%c3, %c0_19] : memref<8x256xf32, #tpu.memory_space<vmem>>, vector<1x32xf32>
    %38 = vector.broadcast %37 : vector<1x32xf32> to vector<2x32xf32>
    %39 = arith.addf %36, %38 : vector<2x32xf32>
    %40 = vector.extract_strided_slice %39 {offsets = [0, 0], sizes = [2, 16], strides = [1, 1]} : vector<2x32xf32> to vector<2x16xf32>
    %41 = vector.extract_strided_slice %39 {offsets = [0, 16], sizes = [2, 16], strides = [1, 1]} : vector<2x32xf32> to vector<2x16xf32>
    %cst_20 = arith.constant 5.000000e-01 : f32
    %42 = vector.broadcast %cst_20 : f32 to vector<2x16xf32>
    %43 = arith.mulf %42, %41 : vector<2x16xf32>
    %44 = math.exp %43 : vector<2x16xf32>
    %c0_21 = arith.constant 0 : index
    %c0_22 = arith.constant 0 : index
    %45 = vector.load %arg2[%c0_21, %c0_22] : memref<2x16xf32, #tpu.memory_space<vmem>>, vector<2x16xf32>
    %46 = arith.mulf %45, %44 : vector<2x16xf32>
    %47 = arith.addf %40, %46 : vector<2x16xf32>
    %48 = arith.truncf %47 : vector<2x16xf32> to vector<2x16xbf16>
    %c960 = arith.constant 960 : index
    %c0_23 = arith.constant 0 : index
    %49 = vector.load %arg3[%c960, %c0_23] : memref<1184x256xbf16, #tpu.memory_space<vmem>>, vector<16x64xbf16>
    %cst_24 = arith.constant dense<0.000000e+00> : vector<2x64xf32>
    %50 = tpu.matmul %48, %49, %cst_24 {dimension_numbers = #tpu.dot_dimension_numbers<[1], [0], [0], [1], [0, 0, 1, 1], [], []>} : vector<2x16xbf16>, vector<16x64xbf16>, vector<2x64xf32> -> vector<2x64xf32>
    %c4 = arith.constant 4 : index
    %c0_25 = arith.constant 0 : index
    %51 = vector.load %arg4[%c4, %c0_25] : memref<8x256xf32, #tpu.memory_space<vmem>>, vector<1x64xf32>
    %52 = vector.broadcast %51 : vector<1x64xf32> to vector<2x64xf32>
    %53 = arith.addf %50, %52 : vector<2x64xf32>
    %54 = arith.truncf %53 : vector<2x64xf32> to vector<2x64xbf16>
    %c976 = arith.constant 976 : index
    %c0_26 = arith.constant 0 : index
    %55 = vector.load %arg3[%c976, %c0_26] : memref<1184x256xbf16, #tpu.memory_space<vmem>>, vector<64x48xbf16>
    %cst_27 = arith.constant dense<0.000000e+00> : vector<2x48xf32>
    %56 = tpu.matmul %54, %55, %cst_27 {dimension_numbers = #tpu.dot_dimension_numbers<[1], [0], [0], [1], [0, 0, 1, 1], [], []>} : vector<2x64xbf16>, vector<64x48xbf16>, vector<2x48xf32> -> vector<2x48xf32>
    %c5 = arith.constant 5 : index
    %c0_28 = arith.constant 0 : index
    %57 = vector.load %arg4[%c5, %c0_28] : memref<8x256xf32, #tpu.memory_space<vmem>>, vector<1x48xf32>
    %58 = vector.broadcast %57 : vector<1x48xf32> to vector<2x48xf32>
    %59 = arith.addf %56, %58 : vector<2x48xf32>
    %cst_29 = arith.constant 0.000000e+00 : f32
    %60 = vector.broadcast %cst_29 : f32 to vector<2x48xf32>
    %61 = arith.cmpf oge, %59, %60 : vector<2x48xf32>
    %cst_30 = arith.constant 2.000000e-01 : f32
    %62 = vector.broadcast %cst_30 : f32 to vector<2x48xf32>
    %63 = arith.mulf %62, %59 : vector<2x48xf32>
    %64 = arith.select %61, %59, %63 : vector<2x48xi1>, vector<2x48xf32>
    %65 = arith.truncf %64 : vector<2x48xf32> to vector<2x48xbf16>
    %c1040 = arith.constant 1040 : index
    %c0_31 = arith.constant 0 : index
    %66 = vector.load %arg3[%c1040, %c0_31] : memref<1184x256xbf16, #tpu.memory_space<vmem>>, vector<48x40xbf16>
    %cst_32 = arith.constant dense<0.000000e+00> : vector<2x40xf32>
    %67 = tpu.matmul %65, %66, %cst_32 {dimension_numbers = #tpu.dot_dimension_numbers<[1], [0], [0], [1], [0, 0, 1, 1], [], []>} : vector<2x48xbf16>, vector<48x40xbf16>, vector<2x40xf32> -> vector<2x40xf32>
    %c6 = arith.constant 6 : index
    %c0_33 = arith.constant 0 : index
    %68 = vector.load %arg4[%c6, %c0_33] : memref<8x256xf32, #tpu.memory_space<vmem>>, vector<1x40xf32>
    %69 = vector.broadcast %68 : vector<1x40xf32> to vector<2x40xf32>
    %70 = arith.addf %67, %69 : vector<2x40xf32>
    %cst_34 = arith.constant 0.000000e+00 : f32
    %71 = vector.broadcast %cst_34 : f32 to vector<2x40xf32>
    %72 = arith.cmpf oge, %70, %71 : vector<2x40xf32>
    %cst_35 = arith.constant 2.000000e-01 : f32
    %73 = vector.broadcast %cst_35 : f32 to vector<2x40xf32>
    %74 = arith.mulf %73, %70 : vector<2x40xf32>
    %75 = arith.select %72, %70, %74 : vector<2x40xi1>, vector<2x40xf32>
    %76 = arith.truncf %75 : vector<2x40xf32> to vector<2x40xbf16>
    %c1088 = arith.constant 1088 : index
    %c0_36 = arith.constant 0 : index
    %77 = vector.load %arg3[%c1088, %c0_36] : memref<1184x256xbf16, #tpu.memory_space<vmem>>, vector<40x36xbf16>
    %cst_37 = arith.constant dense<0.000000e+00> : vector<2x36xf32>
    %78 = tpu.matmul %76, %77, %cst_37 {dimension_numbers = #tpu.dot_dimension_numbers<[1], [0], [0], [1], [0, 0, 1, 1], [], []>} : vector<2x40xbf16>, vector<40x36xbf16>, vector<2x36xf32> -> vector<2x36xf32>
    %c7 = arith.constant 7 : index
    %c0_38 = arith.constant 0 : index
    %79 = vector.load %arg4[%c7, %c0_38] : memref<8x256xf32, #tpu.memory_space<vmem>>, vector<1x36xf32>
    %80 = vector.broadcast %79 : vector<1x36xf32> to vector<2x36xf32>
    %81 = arith.addf %78, %80 : vector<2x36xf32>
    %c0_39 = arith.constant 0 : index
    %c0_40 = arith.constant 0 : index
    %82 = vector.load %arg5[%c0_39, %c0_40] : memref<3x36xf32, #tpu.memory_space<vmem>>, vector<1x36xf32>
    %c1_41 = arith.constant 1 : index
    %c0_42 = arith.constant 0 : index
    %83 = vector.load %arg5[%c1_41, %c0_42] : memref<3x36xf32, #tpu.memory_space<vmem>>, vector<1x36xf32>
    %c2_43 = arith.constant 2 : index
    %c0_44 = arith.constant 0 : index
    %84 = vector.load %arg5[%c2_43, %c0_44] : memref<3x36xf32, #tpu.memory_space<vmem>>, vector<1x36xf32>
    %85 = vector.broadcast %83 : vector<1x36xf32> to vector<2x36xf32>
    %86 = arith.mulf %81, %85 : vector<2x36xf32>
    %87 = vector.broadcast %82 : vector<1x36xf32> to vector<2x36xf32>
    %88 = arith.addf %86, %87 : vector<2x36xf32>
    %89 = arith.mulf %88, %88 : vector<2x36xf32>
    %90 = arith.truncf %89 : vector<2x36xf32> to vector<2x36xbf16>
    %c1136 = arith.constant 1136 : index
    %c0_45 = arith.constant 0 : index
    %91 = vector.load %arg3[%c1136, %c0_45] : memref<1184x256xbf16, #tpu.memory_space<vmem>>, vector<36x36xbf16>
    %cst_46 = arith.constant dense<0.000000e+00> : vector<2x36xf32>
    %92 = tpu.matmul %90, %91, %cst_46 {dimension_numbers = #tpu.dot_dimension_numbers<[1], [0], [0], [1], [0, 0, 1, 1], [], []>} : vector<2x36xbf16>, vector<36x36xbf16>, vector<2x36xf32> -> vector<2x36xf32>
    %cst_47 = arith.constant 9.99999996E-13 : f32
    %93 = vector.broadcast %cst_47 : f32 to vector<2x36xf32>
    %94 = arith.addf %92, %93 : vector<2x36xf32>
    %95 = math.rsqrt %94 : vector<2x36xf32>
    %96 = arith.mulf %88, %95 : vector<2x36xf32>
    %97 = vector.broadcast %82 : vector<1x36xf32> to vector<2x36xf32>
    %98 = arith.subf %96, %97 : vector<2x36xf32>
    %99 = vector.broadcast %84 : vector<1x36xf32> to vector<2x36xf32>
    %100 = arith.mulf %98, %99 : vector<2x36xf32>
    %101 = tpu.iota {dimensions = array<i32: 1>} : vector<2x36xi32>
    %c32_i32 = arith.constant 32 : i32
    %102 = vector.broadcast %c32_i32 : i32 to vector<2x36xi32>
    %103 = arith.cmpi slt, %101, %102 : vector<2x36xi32>
    %104 = arith.select %103, %100, %81 : vector<2x36xi1>, vector<2x36xf32>
    %c0_48 = arith.constant 0 : index
    %c0_49 = arith.constant 0 : index
    %105 = vector.load %arg6[%c0_48, %c0_49] : memref<2x128xf32, #tpu.memory_space<vmem>>, vector<2x16xf32>
    tpu.vector_store %arg6[%c0_48, %c0_49], %40 {strides = array<i32>} : memref<2x128xf32, #tpu.memory_space<vmem>>, vector<2x16xf32>,
    %c0_50 = arith.constant 0 : index
    %c16 = arith.constant 16 : index
    %106 = vector.load %arg6[%c0_50, %c16] : memref<2x128xf32, #tpu.memory_space<vmem>>, vector<2x16xf32>
    tpu.vector_store %arg6[%c0_50, %c16], %41 {strides = array<i32>} : memref<2x128xf32, #tpu.memory_space<vmem>>, vector<2x16xf32>,
    %c0_51 = arith.constant 0 : index
    %c32 = arith.constant 32 : index
    %107 = vector.load %arg6[%c0_51, %c32] : memref<2x128xf32, #tpu.memory_space<vmem>>, vector<2x16xf32>
    tpu.vector_store %arg6[%c0_51, %c32], %47 {strides = array<i32>} : memref<2x128xf32, #tpu.memory_space<vmem>>, vector<2x16xf32>,
    %c0_52 = arith.constant 0 : index
    %c48 = arith.constant 48 : index
    %108 = vector.load %arg6[%c0_52, %c48] : memref<2x128xf32, #tpu.memory_space<vmem>>, vector<2x36xf32>
    tpu.vector_store %arg6[%c0_52, %c48], %104 {strides = array<i32>} : memref<2x128xf32, #tpu.memory_space<vmem>>, vector<2x36xf32>,
    %cst_53 = arith.constant 0.000000e+00 : f32
    %109 = vector.broadcast %cst_53 : f32 to vector<2x44xf32>
    %c0_54 = arith.constant 0 : index
    %c84 = arith.constant 84 : index
    %110 = vector.load %arg6[%c0_54, %c84] : memref<2x128xf32, #tpu.memory_space<vmem>>, vector<2x44xf32>
    tpu.vector_store %arg6[%c0_54, %c84], %109 {strides = array<i32>} : memref<2x128xf32, #tpu.memory_space<vmem>>, vector<2x44xf32>,
    return
  }
  func.func @transform_0(%arg0: i32) -> (i32, i32) {
    %c0_i32 = arith.constant 0 : i32
    %c0_i32_0 = arith.constant 0 : i32
    %c0_i32_1 = arith.constant 0 : i32
    return %c0_i32, %c0_i32_0 : i32, i32
  }
  func.func @transform_1(%arg0: i32) -> (i32, i32) {
    %c0_i32 = arith.constant 0 : i32
    %c0_i32_0 = arith.constant 0 : i32
    %c0_i32_1 = arith.constant 0 : i32
    return %c0_i32, %c0_i32_0 : i32, i32
  }
  func.func @transform_2(%arg0: i32) -> (i32, i32) {
    %c0_i32 = arith.constant 0 : i32
    %c0_i32_0 = arith.constant 0 : i32
    %c0_i32_1 = arith.constant 0 : i32
    return %c0_i32, %c0_i32_0 : i32, i32
  }
  func.func @transform_3(%arg0: i32) -> (i32, i32) {
    %c0_i32 = arith.constant 0 : i32
    %c0_i32_0 = arith.constant 0 : i32
    %c0_i32_1 = arith.constant 0 : i32
    return %c0_i32, %c0_i32_0 : i32, i32
  }
  func.func @transform_4(%arg0: i32) -> (i32, i32) {
    %c0_i32 = arith.constant 0 : i32
    %c0_i32_0 = arith.constant 0 : i32
    %c0_i32_1 = arith.constant 0 : i32
    return %c0_i32, %c0_i32_0 : i32, i32
  }
  func.func @transform_5(%arg0: i32) -> (i32, i32) {
    %c0_i32 = arith.constant 0 : i32
    %c0_i32_0 = arith.constant 0 : i32
    %c0_i32_1 = arith.constant 0 : i32
    return %c0_i32, %c0_i32_0 : i32, i32
  }
}

</mosaic_0001>

<llo_original>
// kernel: autoencoder_forward.1
$region0: #{autoencoder_forward.1}
  #allocation0 [shape = 'u32[]', space=smem, size = 0x4, offset = 0x4, fixed_abs, tag = 'smem constant byte address 0x4 - core index']
  #allocation1 [shape = 'u32[72,128]{1,0:T(1,128)}', space=vmem, size = 0x9000, scoped, tag = 'internal scratch']
  %s0 = inlined_call_operand.vmem [shape: f32[2,512], index: 0, kind: input, shape index: {}]
  %s1 = inlined_call_operand.vmem [shape: f32[2,16], index: 1, kind: input, shape index: {}]
  %s2 = inlined_call_operand.hbm [shape: bf16[1184,256], index: 2, kind: input, shape index: {}]
  %s3 = inlined_call_operand.vmem [shape: f32[8,256], index: 3, kind: input, shape index: {}]
  %s4 = inlined_call_operand.vmem [shape: f32[3,36], index: 4, kind: input, shape index: {}]
  %s5 = inlined_call_operand.vmem [shape: f32[2,128], index: 5, kind: output, shape index: {}]
  %s6 = sld [smem:[#allocation0]]
  $region34: #{autoencoder_forward.1} parent=0
    _
  %s8 = ssub.s32 1, %s6
  %s9 = scalar_select 0, %s8, %s6
  $region1: #{autoencoder_forward.1} parent=0
    #allocation2 [shape = 'u8[606208]{0}', space=vmem, size = 0x94000, scoped, tag = 'input window, operand 2, single buffered']
    #allocation3 [shape = 's32[1]{0}', space=sflag, size = 0x4, scoped, tag = 'scoped memory for autoencoder_forward.1']
    %10 = vsyncpa [#allocation3], 0
    // Predicated region
    $region2: #{autoencoder_forward.1} parent=1 // pred_check
      _
    $region3: #{autoencoder_forward.1} parent=1 // pred_check_branch
      %12 = sbr.rel (0) target = $region5
    $region4: #{autoencoder_forward.1} parent=1 // pred_region
      _
    $region5: #{autoencoder_forward.1} parent=1 // pred_fallthru
      _
    // Predicated region
    $region6: #{autoencoder_forward.1} parent=1 // pred_check
      _
    $region7: #{autoencoder_forward.1} parent=1 // pred_check_branch
      %14 = sbr.rel (0) target = $region9
    $region8: #{autoencoder_forward.1} parent=1 // pred_region
      _
    $region9: #{autoencoder_forward.1} parent=1 // pred_fallthru
      _
    // Predicated region
    $region10: #{autoencoder_forward.1} parent=1 // pred_check
      _
    $region11: #{autoencoder_forward.1} parent=1 // pred_check_branch
      %16 = sbr.rel (0) target = $region13
    $region12: #{autoencoder_forward.1} parent=1 // pred_region
      %18 = vsyncadd [#allocation3], 0
      %s19 = sshll.u32 %s2, 4
      %s20 = int_to_ptr.hbm [resolvable:$true] %s19
      %s21 = sshll.u32 [#allocation2], 4
      %s22 = int_to_ptr.vmem [resolvable:$true] %s21
      %27 = dma.hbm_to_vmem [thread:$0]  %s20, 18944, %s22, [#allocation3], 128, 128, 8
    $region13: #{autoencoder_forward.1} parent=1 // pred_fallthru
      _
    // Predicated region
    $region14: #{autoencoder_forward.1} parent=1 // pred_check
      _
    $region15: #{autoencoder_forward.1} parent=1 // pred_check_branch
      %29 = sbr.rel (0) target = $region17
    $region16: #{autoencoder_forward.1} parent=1 // pred_region
      _
    $region17: #{autoencoder_forward.1} parent=1 // pred_fallthru
      _
    // Predicated region
    $region18: #{autoencoder_forward.1} parent=1 // pred_check
      _
    $region19: #{autoencoder_forward.1} parent=1 // pred_check_branch
      %31 = sbr.rel (0) target = $region21
    $region20: #{autoencoder_forward.1} parent=1 // pred_region
      _
    $region21: #{autoencoder_forward.1} parent=1 // pred_fallthru
      _
    // Predicated region
    $region22: #{autoencoder_forward.1} parent=1 // pred_check
      _
    $region23: #{autoencoder_forward.1} parent=1 // pred_check_branch
      %33 = sbr.rel (0) target = $region25
    $region24: #{autoencoder_forward.1} parent=1 // pred_region
      %35 = dma.done [#allocation3], 18944
    $region25: #{autoencoder_forward.1} parent=1 // pred_fallthru
      _
    %v37 = vld [vmem:[%s0] sm:$0xff]
    %39 = vst [vmem:[#allocation1] ss:$4 sm:$0xff] %v37
    %v40 = vld.sshfl [vmem:[#allocation1] sm:$0xff pattern:$0x73625140]
    %v41 = vld.sshfl [vmem:[#allocation1 + $0x8] sm:$0xff pattern:$0x73625140]
    %v42 = vld.sshfl [vmem:[#allocation1 + $0x10] sm:$0xff pattern:$0x73625140]
    %v43 = vld.sshfl [vmem:[#allocation1 + $0x18] sm:$0xff pattern:$0x73625140]
    %v48 = vpack.c.bf16 %v40, %v40
    %v49 = vpack.c.bf16 %v41, %v41
    %v50 = vpack.c.bf16 %v42, %v42
    %v51 = vpack.c.bf16 %v43, %v43
    %v52 = vld [vmem:[#allocation2] sm:$0xff]
    %v53 = vld [vmem:[#allocation2 + $0x8] sm:$0xff]
    %v54 = vld [vmem:[#allocation2 + $0x10] sm:$0xff]
    %v55 = vld [vmem:[#allocation2 + $0x18] sm:$0xff]
    %v56 = vld [vmem:[#allocation2 + $0x20] sm:$0xff]
    %v57 = vld [vmem:[#allocation2 + $0x28] sm:$0xff]
    %v58 = vld [vmem:[#allocation2 + $0x30] sm:$0xff]
    %v59 = vld [vmem:[#allocation2 + $0x38] sm:$0xff]
    %v60 = vld [vmem:[#allocation2 + $0x40] sm:$0xff]
    %v61 = vld [vmem:[#allocation2 + $0x48] sm:$0xff]
    %v62 = vld [vmem:[#allocation2 + $0x50] sm:$0xff]
    %v63 = vld [vmem:[#allocation2 + $0x58] sm:$0xff]
    %v64 = vld [vmem:[#allocation2 + $0x60] sm:$0xff]
    %v65 = vld [vmem:[#allocation2 + $0x68] sm:$0xff]
    %v66 = vld [vmem:[#allocation2 + $0x70] sm:$0xff]
    %v67 = vld [vmem:[#allocation2 + $0x78] sm:$0xff]
    %v68 = vld [vmem:[#allocation2 + $0x80] sm:$0xff]
    %v69 = vld [vmem:[#allocation2 + $0x88] sm:$0xff]
    %v70 = vld [vmem:[#allocation2 + $0x90] sm:$0xff]
    %v71 = vld [vmem:[#allocation2 + $0x98] sm:$0xff]
    %v72 = vld [vmem:[#allocation2 + $0xa0] sm:$0xff]
    %v73 = vld [vmem:[#allocation2 + $0xa8] sm:$0xff]
    %v74 = vld [vmem:[#allocation2 + $0xb0] sm:$0xff]
    %v75 = vld [vmem:[#allocation2 + $0xb8] sm:$0xff]
    %v76 = vld [vmem:[#allocation2 + $0xc0] sm:$0xff]
    %v77 = vld [vmem:[#allocation2 + $0xc8] sm:$0xff]
    %v78 = vld [vmem:[#allocation2 + $0xd0] sm:$0xff]
    %v79 = vld [vmem:[#allocation2 + $0xd8] sm:$0xff]
    %v80 = vld [vmem:[#allocation2 + $0xe0] sm:$0xff]
    %v81 = vld [vmem:[#allocation2 + $0xe8] sm:$0xff]
    %v82 = vld [vmem:[#allocation2 + $0xf0] sm:$0xff]
    %v83 = vld [vmem:[#allocation2 + $0xf8] sm:$0xff]
    %v84 = vld [vmem:[#allocation2 + $0x100] sm:$0xff]
    %v85 = vld [vmem:[#allocation2 + $0x108] sm:$0xff]
    %v86 = vld [vmem:[#allocation2 + $0x110] sm:$0xff]
    %v87 = vld [vmem:[#allocation2 + $0x118] sm:$0xff]
    %v88 = vld [vmem:[#allocation2 + $0x120] sm:$0xff]
    %v89 = vld [vmem:[#allocation2 + $0x128] sm:$0xff]
    %v90 = vld [vmem:[#allocation2 + $0x130] sm:$0xff]
    %v91 = vld [vmem:[#allocation2 + $0x138] sm:$0xff]
    %v92 = vld [vmem:[#allocation2 + $0x140] sm:$0xff]
    %v93 = vld [vmem:[#allocation2 + $0x148] sm:$0xff]
    %v94 = vld [vmem:[#allocation2 + $0x150] sm:$0xff]
    %v95 = vld [vmem:[#allocation2 + $0x158] sm:$0xff]
    %v96 = vld [vmem:[#allocation2 + $0x160] sm:$0xff]
    %v97 = vld [vmem:[#allocation2 + $0x168] sm:$0xff]
    %v98 = vld [vmem:[#allocation2 + $0x170] sm:$0xff]
    %v99 = vld [vmem:[#allocation2 + $0x178] sm:$0xff]
    %v100 = vld [vmem:[#allocation2 + $0x180] sm:$0xff]
    %v101 = vld [vmem:[#allocation2 + $0x188] sm:$0xff]
    %v102 = vld [vmem:[#allocation2 + $0x190] sm:$0xff]
    %v103 = vld [vmem:[#allocation2 + $0x198] sm:$0xff]
    %v104 = vld [vmem:[#allocation2 + $0x1a0] sm:$0xff]
    %v105 = vld [vmem:[#allocation2 + $0x1a8] sm:$0xff]
    %v106 = vld [vmem:[#allocation2 + $0x1b0] sm:$0xff]
    %v107 = vld [vmem:[#allocation2 + $0x1b8] sm:$0xff]
    %v108 = vld [vmem:[#allocation2 + $0x1c0] sm:$0xff]
    %v109 = vld [vmem:[#allocation2 + $0x1c8] sm:$0xff]
    %v110 = vld [vmem:[#allocation2 + $0x1d0] sm:$0xff]
    %v111 = vld [vmem:[#allocation2 + $0x1d8] sm:$0xff]
    %v112 = vld [vmem:[#allocation2 + $0x1e0] sm:$0xff]
    %v113 = vld [vmem:[#allocation2 + $0x1e8] sm:$0xff]
    %v114 = vld [vmem:[#allocation2 + $0x1f0] sm:$0xff]
    %v115 = vld [vmem:[#allocation2 + $0x1f8] sm:$0xff]
    %v116 = vld [vmem:[%s3] ss:$8 sm:$0x3]
    %v118 = vperm.slane %v116, 0
    %v119 = vperm.slane %v116, 1
    %v186 = vunpack.c.l.b16 %v52
    %v187 = vunpack.c.h.b16 %v52
    %v188 = vunpack.c.l.b16 %v53
    %v189 = vunpack.c.h.b16 %v53
    %v190 = vunpack.c.l.b16 %v54
    %v191 = vunpack.c.h.b16 %v54
    %v192 = vunpack.c.l.b16 %v55
    %v193 = vunpack.c.h.b16 %v55
    %v194 = vunpack.c.l.b16 %v56
    %v195 = vunpack.c.h.b16 %v56
    %v196 = vunpack.c.l.b16 %v57
    %v197 = vunpack.c.h.b16 %v57
    %v198 = vunpack.c.l.b16 %v58
    %v199 = vunpack.c.h.b16 %v58
    %v200 = vunpack.c.l.b16 %v59
    %v201 = vunpack.c.h.b16 %v59
    %v202 = vunpack.c.l.b16 %v60
    %v203 = vunpack.c.h.b16 %v60
    %v204 = vunpack.c.l.b16 %v61
    %v205 = vunpack.c.h.b16 %v61
    %v206 = vunpack.c.l.b16 %v62
    %v207 = vunpack.c.h.b16 %v62
    %v208 = vunpack.c.l.b16 %v63
    %v209 = vunpack.c.h.b16 %v63
    %v210 = vunpack.c.l.b16 %v64
    %v211 = vunpack.c.h.b16 %v64
    %v212 = vunpack.c.l.b16 %v65
    %v213 = vunpack.c.h.b16 %v65
    %v214 = vunpack.c.l.b16 %v66
    %v215 = vunpack.c.h.b16 %v66
    %v216 = vunpack.c.l.b16 %v67
    %v217 = vunpack.c.h.b16 %v67
    %v218 = vunpack.c.l.b16 %v68
    %v219 = vunpack.c.h.b16 %v68
    %v220 = vunpack.c.l.b16 %v69
    %v221 = vunpack.c.h.b16 %v69
    %v222 = vunpack.c.l.b16 %v70
    %v223 = vunpack.c.h.b16 %v70
    %v224 = vunpack.c.l.b16 %v71
    %v225 = vunpack.c.h.b16 %v71
    %v226 = vunpack.c.l.b16 %v72
    %v227 = vunpack.c.h.b16 %v72
    %v228 = vunpack.c.l.b16 %v73
    %v229 = vunpack.c.h.b16 %v73
    %v230 = vunpack.c.l.b16 %v74
    %v231 = vunpack.c.h.b16 %v74
    %v232 = vunpack.c.l.b16 %v75
    %v233 = vunpack.c.h.b16 %v75
    %v234 = vunpack.c.l.b16 %v76
    %v235 = vunpack.c.h.b16 %v76
    %v236 = vunpack.c.l.b16 %v77
    %v237 = vunpack.c.h.b16 %v77
    %v238 = vunpack.c.l.b16 %v78
    %v239 = vunpack.c.h.b16 %v78
    %v240 = vunpack.c.l.b16 %v79
    %v241 = vunpack.c.h.b16 %v79
    %v242 = vunpack.c.l.b16 %v80
    %v243 = vunpack.c.h.b16 %v80
    %v244 = vunpack.c.l.b16 %v81
    %v245 = vunpack.c.h.b16 %v81
    %v246 = vunpack.c.l.b16 %v82
    %v247 = vunpack.c.h.b16 %v82
    %v248 = vunpack.c.l.b16 %v83
    %v249 = vunpack.c.h.b16 %v83
    %v250 = vunpack.c.l.b16 %v84
    %v251 = vunpack.c.h.b16 %v84
    %v252 = vunpack.c.l.b16 %v85
    %v253 = vunpack.c.h.b16 %v85
    %v254 = vunpack.c.l.b16 %v86
    %v255 = vunpack.c.h.b16 %v86
    %v256 = vunpack.c.l.b16 %v87
    %v257 = vunpack.c.h.b16 %v87
    %v258 = vunpack.c.l.b16 %v88
    %v259 = vunpack.c.h.b16 %v88
    %v260 = vunpack.c.l.b16 %v89
    %v261 = vunpack.c.h.b16 %v89
    %v262 = vunpack.c.l.b16 %v90
    %v263 = vunpack.c.h.b16 %v90
    %v264 = vunpack.c.l.b16 %v91
    %v265 = vunpack.c.h.b16 %v91
    %v266 = vunpack.c.l.b16 %v92
    %v267 = vunpack.c.h.b16 %v92
    %v268 = vunpack.c.l.b16 %v93
    %v269 = vunpack.c.h.b16 %v93
    %v270 = vunpack.c.l.b16 %v94
    %v271 = vunpack.c.h.b16 %v94
    %v272 = vunpack.c.l.b16 %v95
    %v273 = vunpack.c.h.b16 %v95
    %v274 = vunpack.c.l.b16 %v96
    %v275 = vunpack.c.h.b16 %v96
    %v276 = vunpack.c.l.b16 %v97
    %v277 = vunpack.c.h.b16 %v97
    %v278 = vunpack.c.l.b16 %v98
    %v279 = vunpack.c.h.b16 %v98
    %v280 = vunpack.c.l.b16 %v99
    %v281 = vunpack.c.h.b16 %v99
    %v282 = vunpack.c.l.b16 %v100
    %v283 = vunpack.c.h.b16 %v100
    %v284 = vunpack.c.l.b16 %v101
    %v285 = vunpack.c.h.b16 %v101
    %v286 = vunpack.c.l.b16 %v102
    %v287 = vunpack.c.h.b16 %v102
    %v288 = vunpack.c.l.b16 %v103
    %v289 = vunpack.c.h.b16 %v103
    %v290 = vunpack.c.l.b16 %v104
    %v291 = vunpack.c.h.b16 %v104
    %v292 = vunpack.c.l.b16 %v105
    %v293 = vunpack.c.h.b16 %v105
    %v294 = vunpack.c.l.b16 %v106
    %v295 = vunpack.c.h.b16 %v106
    %v296 = vunpack.c.l.b16 %v107
    %v297 = vunpack.c.h.b16 %v107
    %v298 = vunpack.c.l.b16 %v108
    %v299 = vunpack.c.h.b16 %v108
    %v300 = vunpack.c.l.b16 %v109
    %v301 = vunpack.c.h.b16 %v109
    %v302 = vunpack.c.l.b16 %v110
    %v303 = vunpack.c.h.b16 %v110
    %v304 = vunpack.c.l.b16 %v111
    %v305 = vunpack.c.h.b16 %v111
    %v306 = vunpack.c.l.b16 %v112
    %v307 = vunpack.c.h.b16 %v112
    %v308 = vunpack.c.l.b16 %v113
    %v309 = vunpack.c.h.b16 %v113
    %v310 = vunpack.c.l.b16 %v114
    %v311 = vunpack.c.h.b16 %v114
    %v312 = vunpack.c.l.b16 %v115
    %v313 = vunpack.c.h.b16 %v115
    %v314 = vpack.c.b16 %v188, %v186
    %v315 = vpack.c.b16 %v189, %v187
    %v316 = vpack.c.b16 %v192, %v190
    %v317 = vpack.c.b16 %v193, %v191
    %v318 = vpack.c.b16 %v196, %v194
    %v319 = vpack.c.b16 %v197, %v195
    %v320 = vpack.c.b16 %v200, %v198
    %v321 = vpack.c.b16 %v201, %v199
    %v322 = vpack.c.b16 %v204, %v202
    %v323 = vpack.c.b16 %v205, %v203
    %v324 = vpack.c.b16 %v208, %v206
    %v325 = vpack.c.b16 %v209, %v207
    %v326 = vpack.c.b16 %v212, %v210
    %v327 = vpack.c.b16 %v213, %v211
    %v328 = vpack.c.b16 %v216, %v214
    %v329 = vpack.c.b16 %v217, %v215
    %v330 = vpack.c.b16 %v220, %v218
    %v331 = vpack.c.b16 %v221, %v219
    %v332 = vpack.c.b16 %v224, %v222
    %v333 = vpack.c.b16 %v225, %v223
    %v334 = vpack.c.b16 %v228, %v226
    %v335 = vpack.c.b16 %v229, %v227
    %v336 = vpack.c.b16 %v232, %v230
    %v337 = vpack.c.b16 %v233, %v231
    %v338 = vpack.c.b16 %v236, %v234
    %v339 = vpack.c.b16 %v237, %v235
    %v340 = vpack.c.b16 %v240, %v238
    %v341 = vpack.c.b16 %v241, %v239
    %v342 = vpack.c.b16 %v244, %v242
    %v343 = vpack.c.b16 %v245, %v243
    %v344 = vpack.c.b16 %v248, %v246
    %v345 = vpack.c.b16 %v249, %v247
    %v346 = vpack.c.b16 %v252, %v250
    %v347 = vpack.c.b16 %v253, %v251
    %v348 = vpack.c.b16 %v256, %v254
    %v349 = vpack.c.b16 %v257, %v255
    %v350 = vpack.c.b16 %v260, %v258
    %v351 = vpack.c.b16 %v261, %v259
    %v352 = vpack.c.b16 %v264, %v262
    %v353 = vpack.c.b16 %v265, %v263
    %v354 = vpack.c.b16 %v268, %v266
    %v355 = vpack.c.b16 %v269, %v267
    %v356 = vpack.c.b16 %v272, %v270
    %v357 = vpack.c.b16 %v273, %v271
    %v358 = vpack.c.b16 %v276, %v274
    %v359 = vpack.c.b16 %v277, %v275
    %v360 = vpack.c.b16 %v280, %v278
    %v361 = vpack.c.b16 %v281, %v279
    %v362 = vpack.c.b16 %v284, %v282
    %v363 = vpack.c.b16 %v285, %v283
    %v364 = vpack.c.b16 %v288, %v286
    %v365 = vpack.c.b16 %v289, %v287
    %v366 = vpack.c.b16 %v292, %v290
    %v367 = vpack.c.b16 %v293, %v291
    %v368 = vpack.c.b16 %v296, %v294
    %v369 = vpack.c.b16 %v297, %v295
    %v370 = vpack.c.b16 %v300, %v298
    %v371 = vpack.c.b16 %v301, %v299
    %v372 = vpack.c.b16 %v304, %v302
    %v373 = vpack.c.b16 %v305, %v303
    %v374 = vpack.c.b16 %v308, %v306
    %v375 = vpack.c.b16 %v309, %v307
    %v376 = vpack.c.b16 %v312, %v310
    %v377 = vpack.c.b16 %v313, %v311
    %442 = vmatpush.bf16.msra.mxu0 %v328
    %443 = vmatpush.bf16.msra.mxu0 %v326
    %444 = vmatpush.bf16.msra.mxu0 %v324
    %445 = vmatpush.bf16.msra.mxu0 %v322
    %446 = vmatpush.bf16.msra.mxu0 %v320
    %447 = vmatpush.bf16.msra.mxu0 %v318
    %448 = vmatpush.bf16.msra.mxu0 %v316
    %449 = vmatpush.bf16.msra.mxu0 %v314
    %450 = vmatmul.bf16.gmra.mxu0 %v48
    %v451 = vpop.f32.mrf.mxu0
    %v452 = vadd.f32 %v118, %v451
    %v453 = vpop.f32.mrf.mxu0
    %454 = vdwg.mxu0
    %455 = vmatpush.bf16.msra.mxu0 %v344
    %456 = vmatpush.bf16.msra.mxu0 %v342
    %457 = vmatpush.bf16.msra.mxu0 %v340
    %458 = vmatpush.bf16.msra.mxu0 %v338
    %459 = vmatpush.bf16.msra.mxu0 %v336
    %460 = vmatpush.bf16.msra.mxu0 %v334
    %461 = vmatpush.bf16.msra.mxu0 %v332
    %462 = vmatpush.bf16.msra.mxu0 %v330
    %463 = vmatmul.bf16.gmra.mxu0 %v49
    %v464 = vpop.f32.mrf.mxu0
    %v465 = vadd.f32 %v452, %v464
    %v466 = vpop.f32.mrf.mxu0
    %467 = vdwg.mxu0
    %468 = vmatpush.bf16.msra.mxu0 %v360
    %469 = vmatpush.bf16.msra.mxu0 %v358
    %470 = vmatpush.bf16.msra.mxu0 %v356
    %471 = vmatpush.bf16.msra.mxu0 %v354
    %472 = vmatpush.bf16.msra.mxu0 %v352
    %473 = vmatpush.bf16.msra.mxu0 %v350
    %474 = vmatpush.bf16.msra.mxu0 %v348
    %475 = vmatpush.bf16.msra.mxu0 %v346
    %476 = vmatmul.bf16.gmra.mxu0 %v50
    %v477 = vpop.f32.mrf.mxu0
    %v478 = vadd.f32 %v465, %v477
    %v479 = vpop.f32.mrf.mxu0
    %480 = vdwg.mxu0
    %481 = vmatpush.bf16.msra.mxu0 %v376
    %482 = vmatpush.bf16.msra.mxu0 %v374
    %483 = vmatpush.bf16.msra.mxu0 %v372
    %484 = vmatpush.bf16.msra.mxu0 %v370
    %485 = vmatpush.bf16.msra.mxu0 %v368
    %486 = vmatpush.bf16.msra.mxu0 %v366
    %487 = vmatpush.bf16.msra.mxu0 %v364
    %488 = vmatpush.bf16.msra.mxu0 %v362
    %489 = vmatmul.bf16.gmra.mxu0 %v51
    %v490 = vpop.f32.mrf.mxu0
    %v491 = vadd.f32 %v478, %v490
    %v492 = vpop.f32.mrf.mxu0
    %493 = vdwg.mxu0
    %494 = vmatpush.bf16.msra.mxu0 %v329
    %495 = vmatpush.bf16.msra.mxu0 %v327
    %496 = vmatpush.bf16.msra.mxu0 %v325
    %497 = vmatpush.bf16.msra.mxu0 %v323
    %498 = vmatpush.bf16.msra.mxu0 %v321
    %499 = vmatpush.bf16.msra.mxu0 %v319
    %500 = vmatpush.bf16.msra.mxu0 %v317
    %501 = vmatpush.bf16.msra.mxu0 %v315
    %502 = vmatmul.bf16.gmra.mxu0 %v48
    %v503 = vpop.f32.mrf.mxu0
    %v504 = vadd.f32 %v119, %v503
    %v505 = vpop.f32.mrf.mxu0
    %506 = vdwg.mxu0
    %507 = vmatpush.bf16.msra.mxu0 %v345
    %508 = vmatpush.bf16.msra.mxu0 %v343
    %509 = vmatpush.bf16.msra.mxu0 %v341
    %510 = vmatpush.bf16.msra.mxu0 %v339
    %511 = vmatpush.bf16.msra.mxu0 %v337
    %512 = vmatpush.bf16.msra.mxu0 %v335
    %513 = vmatpush.bf16.msra.mxu0 %v333
    %514 = vmatpush.bf16.msra.mxu0 %v331
    %515 = vmatmul.bf16.gmra.mxu0 %v49
    %v516 = vpop.f32.mrf.mxu0
    %v517 = vadd.f32 %v504, %v516
    %v518 = vpop.f32.mrf.mxu0
    %519 = vdwg.mxu0
    %520 = vmatpush.bf16.msra.mxu0 %v361
    %521 = vmatpush.bf16.msra.mxu0 %v359
    %522 = vmatpush.bf16.msra.mxu0 %v357
    %523 = vmatpush.bf16.msra.mxu0 %v355
    %524 = vmatpush.bf16.msra.mxu0 %v353
    %525 = vmatpush.bf16.msra.mxu0 %v351
    %526 = vmatpush.bf16.msra.mxu0 %v349
    %527 = vmatpush.bf16.msra.mxu0 %v347
    %528 = vmatmul.bf16.gmra.mxu0 %v50
    %v529 = vpop.f32.mrf.mxu0
    %v530 = vadd.f32 %v517, %v529
    %v531 = vpop.f32.mrf.mxu0
    %532 = vdwg.mxu0
    %533 = vmatpush.bf16.msra.mxu0 %v377
    %534 = vmatpush.bf16.msra.mxu0 %v375
    %535 = vmatpush.bf16.msra.mxu0 %v373
    %536 = vmatpush.bf16.msra.mxu0 %v371
    %537 = vmatpush.bf16.msra.mxu0 %v369
    %538 = vmatpush.bf16.msra.mxu0 %v367
    %539 = vmatpush.bf16.msra.mxu0 %v365
    %540 = vmatpush.bf16.msra.mxu0 %v363
    %541 = vmatmul.bf16.gmra.mxu0 %v51
    %v542 = vpop.f32.mrf.mxu0
    %v543 = vadd.f32 %v530, %v542
    %v544 = vpop.f32.mrf.mxu0
    %545 = vdwg.mxu0
    %vm546 = vcmp.ge.f32.partialorder %v491, 0.0
    %vm547 = vcmp.ge.f32.partialorder %v543, 0.0
    %v548 = vmul.f32 %v491, 0.2
    %v549 = vmul.f32 %v543, 0.2
    %v550 = vsel %vm546, %v491, %v548
    %v551 = vsel %vm547, %v543, %v549
    %v552 = vpack.c.bf16 %v550, %v550
    %v553 = vpack.c.bf16 %v551, %v551
    %v554 = vld [vmem:[#allocation2 + $0x200] sm:$0xf]
    %v555 = vld [vmem:[#allocation2 + $0x208] sm:$0xf]
    %v556 = vld [vmem:[#allocation2 + $0x210] sm:$0xf]
    %v557 = vld [vmem:[#allocation2 + $0x218] sm:$0xf]
    %v558 = vld [vmem:[#allocation2 + $0x220] sm:$0xf]
    %v559 = vld [vmem:[#allocation2 + $0x228] sm:$0xf]
    %v560 = vld [vmem:[#allocation2 + $0x230] sm:$0xf]
    %v561 = vld [vmem:[#allocation2 + $0x238] sm:$0xf]
    %v562 = vld [vmem:[#allocation2 + $0x240] sm:$0xf]
    %v563 = vld [vmem:[#allocation2 + $0x248] sm:$0xf]
    %v564 = vld [vmem:[#allocation2 + $0x250] sm:$0xf]
    %v565 = vld [vmem:[#allocation2 + $0x258] sm:$0xf]
    %v566 = vld [vmem:[#allocation2 + $0x260] sm:$0xf]
    %v567 = vld [vmem:[#allocation2 + $0x268] sm:$0xf]
    %v568 = vld [vmem:[#allocation2 + $0x270] sm:$0xf]
    %v569 = vld [vmem:[#allocation2 + $0x278] sm:$0xf]
    %v570 = vld [vmem:[#allocation2 + $0x280] sm:$0xf]
    %v571 = vld [vmem:[#allocation2 + $0x288] sm:$0xf]
    %v572 = vld [vmem:[#allocation2 + $0x290] sm:$0xf]
    %v573 = vld [vmem:[#allocation2 + $0x298] sm:$0xf]
    %v574 = vld [vmem:[#allocation2 + $0x2a0] sm:$0xf]
    %v575 = vld [vmem:[#allocation2 + $0x2a8] sm:$0xf]
    %v576 = vld [vmem:[#allocation2 + $0x2b0] sm:$0xf]
    %v577 = vld [vmem:[#allocation2 + $0x2b8] sm:$0xf]
    %v578 = vld [vmem:[#allocation2 + $0x2c0] sm:$0xf]
    %v579 = vld [vmem:[#allocation2 + $0x2c8] sm:$0xf]
    %v580 = vld [vmem:[#allocation2 + $0x2d0] sm:$0xf]
    %v581 = vld [vmem:[#allocation2 + $0x2d8] sm:$0xf]
    %v582 = vld [vmem:[#allocation2 + $0x2e0] sm:$0xf]
    %v583 = vld [vmem:[#allocation2 + $0x2e8] sm:$0xf]
    %v584 = vld [vmem:[#allocation2 + $0x2f0] sm:$0xf]
    %v585 = vld [vmem:[#allocation2 + $0x2f8] sm:$0xf]
    %v586 = vld [vmem:[%s3 + $0x1] ss:$0 sm:$0xff]
    %v619 = vunpack.c.l.b16 %v554
    %v620 = vunpack.c.l.b16 %v555
    %v621 = vunpack.c.l.b16 %v556
    %v622 = vunpack.c.l.b16 %v557
    %v623 = vunpack.c.l.b16 %v558
    %v624 = vunpack.c.l.b16 %v559
    %v625 = vunpack.c.l.b16 %v560
    %v626 = vunpack.c.l.b16 %v561
    %v627 = vunpack.c.l.b16 %v562
    %v628 = vunpack.c.l.b16 %v563
    %v629 = vunpack.c.l.b16 %v564
    %v630 = vunpack.c.l.b16 %v565
    %v631 = vunpack.c.l.b16 %v566
    %v632 = vunpack.c.l.b16 %v567
    %v633 = vunpack.c.l.b16 %v568
    %v634 = vunpack.c.l.b16 %v569
    %v635 = vunpack.c.l.b16 %v570
    %v636 = vunpack.c.l.b16 %v571
    %v637 = vunpack.c.l.b16 %v572
    %v638 = vunpack.c.l.b16 %v573
    %v639 = vunpack.c.l.b16 %v574
    %v640 = vunpack.c.l.b16 %v575
    %v641 = vunpack.c.l.b16 %v576
    %v642 = vunpack.c.l.b16 %v577
    %v643 = vunpack.c.l.b16 %v578
    %v644 = vunpack.c.l.b16 %v579
    %v645 = vunpack.c.l.b16 %v580
    %v646 = vunpack.c.l.b16 %v581
    %v647 = vunpack.c.l.b16 %v582
    %v648 = vunpack.c.l.b16 %v583
    %v649 = vunpack.c.l.b16 %v584
    %v650 = vunpack.c.l.b16 %v585
    %v651 = vpack.c.b16 %v620, %v619
    %v652 = vpack.c.b16 %v622, %v621
    %v653 = vpack.c.b16 %v624, %v623
    %v654 = vpack.c.b16 %v626, %v625
    %v655 = vpack.c.b16 %v628, %v627
    %v656 = vpack.c.b16 %v630, %v629
    %v657 = vpack.c.b16 %v632, %v631
    %v658 = vpack.c.b16 %v634, %v633
    %v659 = vpack.c.b16 %v636, %v635
    %v660 = vpack.c.b16 %v638, %v637
    %v661 = vpack.c.b16 %v640, %v639
    %v662 = vpack.c.b16 %v642, %v641
    %v663 = vpack.c.b16 %v644, %v643
    %v664 = vpack.c.b16 %v646, %v645
    %v665 = vpack.c.b16 %v648, %v647
    %v666 = vpack.c.b16 %v650, %v649
    %683 = vmatpush.bf16.msra.mxu0 %v658
    %684 = vmatpush.bf16.msra.mxu0 %v657
    %685 = vmatpush.bf16.msra.mxu0 %v656
    %686 = vmatpush.bf16.msra.mxu0 %v655
    %687 = vmatpush.bf16.msra.mxu0 %v654
    %688 = vmatpush.bf16.msra.mxu0 %v653
    %689 = vmatpush.bf16.msra.mxu0 %v652
    %690 = vmatpush.bf16.msra.mxu0 %v651
    %691 = vmatmul.bf16.gmra.mxu0 %v552
    %v692 = vpop.f32.mrf.mxu0
    %v693 = vadd.f32 %v586, %v692
    %v694 = vpop.f32.mrf.mxu0
    %695 = vdwg.mxu0
    %696 = vmatpush.bf16.msra.mxu0 %v666
    %697 = vmatpush.bf16.msra.mxu0 %v665
    %698 = vmatpush.bf16.msra.mxu0 %v664
    %699 = vmatpush.bf16.msra.mxu0 %v663
    %700 = vmatpush.bf16.msra.mxu0 %v662
    %701 = vmatpush.bf16.msra.mxu0 %v661
    %702 = vmatpush.bf16.msra.mxu0 %v660
    %703 = vmatpush.bf16.msra.mxu0 %v659
    %704 = vmatmul.bf16.gmra.mxu0 %v553
    %v705 = vpop.f32.mrf.mxu0
    %v706 = vadd.f32 %v693, %v705
    %v707 = vpop.f32.mrf.mxu0
    %708 = vdwg.mxu0
    %vm709 = vcmp.ge.f32.partialorder %v706, 0.0
    %v710 = vmul.f32 %v706, 0.2
    %v711 = vsel %vm709, %v706, %v710
    %v712 = vpack.c.bf16 %v711, %v711
    %v713 = vld [vmem:[#allocation2 + $0x300] sm:$0xf]
    %v714 = vld [vmem:[#allocation2 + $0x308] sm:$0xf]
    %v715 = vld [vmem:[#allocation2 + $0x310] sm:$0xf]
    %v716 = vld [vmem:[#allocation2 + $0x318] sm:$0xf]
    %v717 = vld [vmem:[#allocation2 + $0x320] sm:$0xf]
    %v718 = vld [vmem:[#allocation2 + $0x328] sm:$0xf]
    %v719 = vld [vmem:[#allocation2 + $0x330] sm:$0xf]
    %v720 = vld [vmem:[#allocation2 + $0x338] sm:$0xf]
    %v721 = vld [vmem:[#allocation2 + $0x340] sm:$0xf]
    %v722 = vld [vmem:[#allocation2 + $0x348] sm:$0xf]
    %v723 = vld [vmem:[#allocation2 + $0x350] sm:$0xf]
    %v724 = vld [vmem:[#allocation2 + $0x358] sm:$0xf]
    %v725 = vld [vmem:[#allocation2 + $0x360] sm:$0xf]
    %v726 = vld [vmem:[#allocation2 + $0x368] sm:$0xf]
    %v727 = vld [vmem:[#allocation2 + $0x370] sm:$0xf]
    %v728 = vld [vmem:[#allocation2 + $0x378] sm:$0xf]
    %v729 = vld [vmem:[%s3 + $0x2] ss:$0 sm:$0xff]
    %v746 = vunpack.c.l.b16 %v713
    %v747 = vunpack.c.l.b16 %v714
    %v748 = vunpack.c.l.b16 %v715
    %v749 = vunpack.c.l.b16 %v716
    %v750 = vunpack.c.l.b16 %v717
    %v751 = vunpack.c.l.b16 %v718
    %v752 = vunpack.c.l.b16 %v719
    %v753 = vunpack.c.l.b16 %v720
    %v754 = vunpack.c.l.b16 %v721
    %v755 = vunpack.c.l.b16 %v722
    %v756 = vunpack.c.l.b16 %v723
    %v757 = vunpack.c.l.b16 %v724
    %v758 = vunpack.c.l.b16 %v725
    %v759 = vunpack.c.l.b16 %v726
    %v760 = vunpack.c.l.b16 %v727
    %v761 = vunpack.c.l.b16 %v728
    %v762 = vpack.c.b16 %v747, %v746
    %v763 = vpack.c.b16 %v749, %v748
    %v764 = vpack.c.b16 %v751, %v750
    %v765 = vpack.c.b16 %v753, %v752
    %v766 = vpack.c.b16 %v755, %v754
    %v767 = vpack.c.b16 %v757, %v756
    %v768 = vpack.c.b16 %v759, %v758
    %v769 = vpack.c.b16 %v761, %v760
    %778 = vmatpush.bf16.msra.mxu0 %v769
    %779 = vmatpush.bf16.msra.mxu0 %v768
    %780 = vmatpush.bf16.msra.mxu0 %v767
    %781 = vmatpush.bf16.msra.mxu0 %v766
    %782 = vmatpush.bf16.msra.mxu0 %v765
    %783 = vmatpush.bf16.msra.mxu0 %v764
    %784 = vmatpush.bf16.msra.mxu0 %v763
    %785 = vmatpush.bf16.msra.mxu0 %v762
    %786 = vmatmul.bf16.gmra.mxu0 %v712
    %v787 = vpop.f32.mrf.mxu0
    %v788 = vadd.f32 %v729, %v787
    %v789 = vpop.f32.mrf.mxu0
    %790 = vdwg.mxu0
    %vm791 = vcmp.ge.f32.partialorder %v788, 0.0
    %v792 = vmul.f32 %v788, 0.2
    %v793 = vsel %vm791, %v788, %v792
    %v794 = vpack.c.bf16 %v793, %v793
    %v795 = vld [vmem:[#allocation2 + $0x380] sm:$0xf]
    %v796 = vld [vmem:[#allocation2 + $0x388] sm:$0xf]
    %v797 = vld [vmem:[#allocation2 + $0x390] sm:$0xf]
    %v798 = vld [vmem:[#allocation2 + $0x398] sm:$0xf]
    %v799 = vld [vmem:[#allocation2 + $0x3a0] sm:$0xf]
    %v800 = vld [vmem:[#allocation2 + $0x3a8] sm:$0xf]
    %v801 = vld [vmem:[#allocation2 + $0x3b0] sm:$0xf]
    %v802 = vld [vmem:[#allocation2 + $0x3b8] sm:$0xf]
    %v803 = vld [vmem:[%s3 + $0x3] ss:$0 sm:$0xff]
    %v812 = vunpack.c.l.b16 %v795
    %v813 = vunpack.c.l.b16 %v796
    %v814 = vunpack.c.l.b16 %v797
    %v815 = vunpack.c.l.b16 %v798
    %v816 = vunpack.c.l.b16 %v799
    %v817 = vunpack.c.l.b16 %v800
    %v818 = vunpack.c.l.b16 %v801
    %v819 = vunpack.c.l.b16 %v802
    %v820 = vpack.c.b16 %v813, %v812
    %v821 = vpack.c.b16 %v815, %v814
    %v822 = vpack.c.b16 %v817, %v816
    %v823 = vpack.c.b16 %v819, %v818
    %vm828 = vcmask 523264
    %v830 = vsel %vm828, %v794, 0
    %832 = vmatpush.bf16.msra.mxu0 0
    %833 = vmatpush.bf16.msra.mxu0 0
    %834 = vmatpush.bf16.msra.mxu0 0
    %835 = vmatpush.bf16.msra.mxu0 0
    %836 = vmatpush.bf16.msra.mxu0 %v823
    %837 = vmatpush.bf16.msra.mxu0 %v822
    %838 = vmatpush.bf16.msra.mxu0 %v821
    %839 = vmatpush.bf16.msra.mxu0 %v820
    %840 = vmatmul.bf16.gmra.mxu0 %v830
    %v841 = vpop.f32.mrf.mxu0
    %v842 = vadd.f32 %v803, %v841
    %v843 = vpop.f32.mrf.mxu0
    %844 = vdwg.mxu0
    %v845 = vmul.f32 %v842, 0.5
    %v846 = vmul.f32 %v845, 1.442695
    %v847 = vpow.pop %v846
    %v848 = vld [vmem:[%s1] sm:$0x3]
    %850 = vrot.lane.b32.xlu0 %v847, 112
    %v851 = vpop.permute.xlu0 %850
    %v853 = vmul.f32 %v848, %v851
    %v854 = vadd.f32 %v842, %v853
    %v855 = vpack.c.bf16 %v854, %v854
    %v856 = vld [vmem:[#allocation2 + $0x3c0] sm:$0xf]
    %v857 = vld [vmem:[#allocation2 + $0x3c8] sm:$0xf]
    %v858 = vld [vmem:[%s3 + $0x4] ss:$0 sm:$0xff]
    %v861 = vunpack.c.l.b16 %v856
    %v862 = vunpack.c.l.b16 %v857
    %v863 = vpack.c.b16 %v862, %v861
    %vm865 = vcmask 130048
    %v867 = vsel %vm865, %v855, 0
    %869 = vmatpush.bf16.msra.mxu0 0
    %870 = vmatpush.bf16.msra.mxu0 0
    %871 = vmatpush.bf16.msra.mxu0 0
    %872 = vmatpush.bf16.msra.mxu0 0
    %873 = vmatpush.bf16.msra.mxu0 0
    %874 = vmatpush.bf16.msra.mxu0 0
    %875 = vmatpush.bf16.msra.mxu0 0
    %876 = vmatpush.bf16.msra.mxu0 %v863
    %877 = vmatmul.bf16.gmra.mxu0 %v867
    %v878 = vpop.f32.mrf.mxu0
    %v879 = vadd.f32 %v858, %v878
    %v880 = vpop.f32.mrf.mxu0
    %881 = vdwg.mxu0
    %v882 = vpack.c.bf16 %v879, %v879
    %v883 = vld [vmem:[#allocation2 + $0x3d0] sm:$0xf]
    %v884 = vld [vmem:[#allocation2 + $0x3d8] sm:$0xf]
    %v885 = vld [vmem:[#allocation2 + $0x3e0] sm:$0xf]
    %v886 = vld [vmem:[#allocation2 + $0x3e8] sm:$0xf]
    %v887 = vld [vmem:[#allocation2 + $0x3f0] sm:$0xf]
    %v888 = vld [vmem:[#allocation2 + $0x3f8] sm:$0xf]
    %v889 = vld [vmem:[#allocation2 + $0x400] sm:$0xf]
    %v890 = vld [vmem:[#allocation2 + $0x408] sm:$0xf]
    %v891 = vld [vmem:[%s3 + $0x5] ss:$0 sm:$0xff]
    %v900 = vunpack.c.l.b16 %v883
    %v901 = vunpack.c.l.b16 %v884
    %v902 = vunpack.c.l.b16 %v885
    %v903 = vunpack.c.l.b16 %v886
    %v904 = vunpack.c.l.b16 %v887
    %v905 = vunpack.c.l.b16 %v888
    %v906 = vunpack.c.l.b16 %v889
    %v907 = vunpack.c.l.b16 %v890
    %v908 = vpack.c.b16 %v901, %v900
    %v909 = vpack.c.b16 %v903, %v902
    %v910 = vpack.c.b16 %v905, %v904
    %v911 = vpack.c.b16 %v907, %v906
    %v917 = vsel %vm828, %v882, 0
    %919 = vmatpush.bf16.msra.mxu0 0
    %920 = vmatpush.bf16.msra.mxu0 0
    %921 = vmatpush.bf16.msra.mxu0 0
    %922 = vmatpush.bf16.msra.mxu0 0
    %923 = vmatpush.bf16.msra.mxu0 %v911
    %924 = vmatpush.bf16.msra.mxu0 %v910
    %925 = vmatpush.bf16.msra.mxu0 %v909
    %926 = vmatpush.bf16.msra.mxu0 %v908
    %927 = vmatmul.bf16.gmra.mxu0 %v917
    %v928 = vpop.f32.mrf.mxu0
    %v929 = vadd.f32 %v891, %v928
    %v930 = vpop.f32.mrf.mxu0
    %931 = vdwg.mxu0
    %vm932 = vcmp.ge.f32.partialorder %v929, 0.0
    %v933 = vmul.f32 %v929, 0.2
    %v934 = vsel %vm932, %v929, %v933
    %v935 = vpack.c.bf16 %v934, %v934
    %v936 = vld [vmem:[#allocation2 + $0x410] sm:$0xf]
    %v937 = vld [vmem:[#allocation2 + $0x418] sm:$0xf]
    %v938 = vld [vmem:[#allocation2 + $0x420] sm:$0xf]
    %v939 = vld [vmem:[#allocation2 + $0x428] sm:$0xf]
    %v940 = vld [vmem:[#allocation2 + $0x430] sm:$0xf]
    %v941 = vld [vmem:[#allocation2 + $0x438] sm:$0xf]
    %v942 = vld [vmem:[%s3 + $0x6] ss:$0 sm:$0xff]
    %v949 = vunpack.c.l.b16 %v936
    %v950 = vunpack.c.l.b16 %v937
    %v951 = vunpack.c.l.b16 %v938
    %v952 = vunpack.c.l.b16 %v939
    %v953 = vunpack.c.l.b16 %v940
    %v954 = vunpack.c.l.b16 %v941
    %v955 = vpack.c.b16 %v950, %v949
    %v956 = vpack.c.b16 %v952, %v951
    %v957 = vpack.c.b16 %v954, %v953
    %vm961 = vcmask 392192
    %v963 = vsel %vm961, %v935, 0
    %965 = vmatpush.bf16.msra.mxu0 0
    %966 = vmatpush.bf16.msra.mxu0 0
    %967 = vmatpush.bf16.msra.mxu0 0
    %968 = vmatpush.bf16.msra.mxu0 0
    %969 = vmatpush.bf16.msra.mxu0 0
    %970 = vmatpush.bf16.msra.mxu0 %v957
    %971 = vmatpush.bf16.msra.mxu0 %v956
    %972 = vmatpush.bf16.msra.mxu0 %v955
    %973 = vmatmul.bf16.gmra.mxu0 %v963
    %v974 = vpop.f32.mrf.mxu0
    %v975 = vadd.f32 %v942, %v974
    %v976 = vpop.f32.mrf.mxu0
    %977 = vdwg.mxu0
    %vm978 = vcmp.ge.f32.partialorder %v975, 0.0
    %v979 = vmul.f32 %v975, 0.2
    %v980 = vsel %vm978, %v975, %v979
    %v981 = vpack.c.bf16 %v980, %v980
    %v982 = vld [vmem:[#allocation2 + $0x440] sm:$0xf]
    %v983 = vld [vmem:[#allocation2 + $0x448] sm:$0xf]
    %v984 = vld [vmem:[#allocation2 + $0x450] sm:$0xf]
    %v985 = vld [vmem:[#allocation2 + $0x458] sm:$0xf]
    %v986 = vld [vmem:[#allocation2 + $0x460] sm:$0xf]
    %v987 = vld [vmem:[%s3 + $0x7] ss:$0 sm:$0xff]
    %v993 = vunpack.c.l.b16 %v982
    %v994 = vunpack.c.l.b16 %v983
    %v995 = vunpack.c.l.b16 %v984
    %v996 = vunpack.c.l.b16 %v985
    %v997 = vunpack.c.l.b16 %v986
    %v998 = vpack.c.b16 %v994, %v993
    %v999 = vpack.c.b16 %v996, %v995
    %v1000 = vpack.c.b16 %v997, %v997
    %vm1003 = vcmask 326656
    %v1005 = vsel %vm1003, %v981, 0
    %vm1007 = vcmask 1043456
    %v1009 = vsel %vm1007, %v1000, 0
    %1011 = vmatpush.bf16.msra.mxu0 0
    %1012 = vmatpush.bf16.msra.mxu0 0
    %1013 = vmatpush.bf16.msra.mxu0 0
    %1014 = vmatpush.bf16.msra.mxu0 0
    %1015 = vmatpush.bf16.msra.mxu0 0
    %1016 = vmatpush.bf16.msra.mxu0 %v1009
    %1017 = vmatpush.bf16.msra.mxu0 %v999
    %1018 = vmatpush.bf16.msra.mxu0 %v998
    %1019 = vmatmul.bf16.gmra.mxu0 %v1005
    %v1020 = vpop.f32.mrf.mxu0
    %v1021 = vadd.f32 %v987, %v1020
    %v1022 = vpop.f32.mrf.mxu0
    %1023 = vdwg.mxu0
    %v1024 = vld [vmem:[%s4] sm:$0x1]
    %v1025 = vld [vmem:[%s4 + $0x1] sm:$0x1]
    %v1026 = vld [vmem:[%s4 + $0x2] sm:$0x1]
    %v1027 = vperm.slane %v1025, 0
    %v1028 = vmul.f32 %v1021, %v1027
    %v1029 = vperm.slane %v1024, 0
    %v1030 = vadd.f32 %v1028, %v1029
    %v1031 = vmul.f32 %v1030, %v1030
    %v1032 = vpack.c.bf16 %v1031, %v1031
    %v1033 = vld [vmem:[#allocation2 + $0x470] sm:$0xf]
    %v1034 = vld [vmem:[#allocation2 + $0x478] sm:$0xf]
    %v1035 = vld [vmem:[#allocation2 + $0x480] sm:$0xf]
    %v1036 = vld [vmem:[#allocation2 + $0x488] sm:$0xf]
    %v1037 = vld [vmem:[#allocation2 + $0x490] sm:$0x3]
    %v1043 = vunpack.c.l.b16 %v1033
    %v1044 = vunpack.c.l.b16 %v1034
    %v1045 = vunpack.c.l.b16 %v1035
    %v1046 = vunpack.c.l.b16 %v1036
    %v1047 = vunpack.c.l.b16 %v1037
    %v1048 = vpack.c.b16 %v1044, %v1043
    %v1049 = vpack.c.b16 %v1046, %v1045
    %v1050 = vpack.c.b16 %v1047, %v1047
    %vm1053 = vcmask 293888
    %v1055 = vsel %vm1053, %v1032, 0
    %vm1057 = vcmask 1041408
    %v1059 = vsel %vm1057, %v1050, 0
    %1061 = vmatpush.bf16.msra.mxu0 0
    %1062 = vmatpush.bf16.msra.mxu0 0
    %1063 = vmatpush.bf16.msra.mxu0 0
    %1064 = vmatpush.bf16.msra.mxu0 0
    %1065 = vmatpush.bf16.msra.mxu0 0
    %1066 = vmatpush.bf16.msra.mxu0 %v1059
    %1067 = vmatpush.bf16.msra.mxu0 %v1049
    %1068 = vmatpush.bf16.msra.mxu0 %v1048
    %1069 = vmatmul.bf16.gmra.mxu0 %v1055
    %v1070 = vpop.f32.mrf.mxu0
    %v1071 = vadd.f32 1e-12, %v1070
    %v1072 = vpop.f32.mrf.mxu0
    %1073 = vdwg.mxu0
    %v1074 = vrsqrt.pop %v1071
    %v1075 = vmul.f32 %v1074, %v1071
    %v1076 = vmul.f32 %v1075, %v1074
    %v1077 = vmul.f32 0.5, %v1076
    %v1078 = vsub.f32 1.5, %v1077
    %v1079 = vmul.f32 %v1074, %v1078
    %vm1080 = vweird.f32 %v1071
    %vm1081 = vweird.f32 %v1074
    %vm1082 = vmor %vm1080, %vm1081
    %v1083 = vsel %vm1082, %v1074, %v1079
    %v1084 = vmul.f32 %v1030, %v1083
    %v1085 = vsub.f32 %v1084, %v1029
    %v1086 = vperm.slane %v1026, 0
    %v1087 = vmul.f32 %v1085, %v1086
    %v1088 = vlaneseq
    %v1089 = vand.u32 %v1088, 127
    %vm1090 = vcmp.lt.s32.totalorder %v1089, 32
    %v1091 = vsel %vm1090, %v1087, %v1021
    %vm1092 = vcmask 123904
    %1093 = vst.msk [vmem:[%s5] sm:$0x3] %vm1092, %v842
    %vm1094 = vcmask 255104
    %1095 = vst.msk [vmem:[%s5] sm:$0x3] %vm1094, %v842
    %1097 = vrot.lane.b32.xlu0 %v854, 32
    %v1098 = vpop.permute.xlu0 %1097
    %vm1100 = vcmask 386304
    %1101 = vst.msk [vmem:[%s5] sm:$0x3] %vm1100, %v1098
    %1103 = vrot.lane.b32.xlu0 %v1091, 48
    %v1104 = vpop.permute.xlu0 %1103
    %vm1106 = vcmask 681344
    %1107 = vst.msk [vmem:[%s5] sm:$0x3] %vm1106, %v1104
    %vm1108 = vcmask 1042080
    %1109 = vst.msk [vmem:[%s5] sm:$0x3] %vm1108, 0.0
    // Predicated region
    $region26: #{autoencoder_forward.1} parent=1 // pred_check
      _
    $region27: #{autoencoder_forward.1} parent=1 // pred_check_branch
      %1111 = sbr.rel (0) target = $region29
    $region28: #{autoencoder_forward.1} parent=1 // pred_region
      _
    $region29: #{autoencoder_forward.1} parent=1 // pred_fallthru
      _
    // Predicated region
    $region30: #{autoencoder_forward.1} parent=1 // pred_check
      _
    $region31: #{autoencoder_forward.1} parent=1 // pred_check_branch
      %1113 = sbr.rel (0) target = $region33
    $region32: #{autoencoder_forward.1} parent=1 // pred_region
      _
    $region33: #{autoencoder_forward.1} parent=1 // pred_fallthru
      _
    %1114 = vsyncpa [#allocation3], 1

</llo_original>
